<compile_context>
chip_gen: v7x
topology: tpu7x:2x2x1
jax: 0.10.0
libtpu: 0.0.40
codegen_flags: <defaults>
</compile_context>

<pallas_src>
import functools
import math

import jax
import jax.numpy as jnp
from jax.experimental import pallas as pl
from jax.experimental.pallas import tpu as pltpu


def _channel_attention_kernel(x_ref, w1t_ref, w2t_ref, o_ref, sum_acc, max_acc,
                              *, hw_valid, hw_tile, num_hw_blocks):
    # x_ref:   (B_TILE, C, HW_TILE) one streaming block of the input
    # w1t_ref: (C, C)  fc1 weight, transposed (in, out)
    # w2t_ref: (C, C)  fc2 weight, transposed (in, out)
    # o_ref:   (1, B_TILE, C) sigmoid channel gate (written at the last HW block)
    # sum_acc / max_acc: (B_TILE, C, 128) f32 per-lane partial accumulators
    k = pl.program_id(1)

    @pl.when(k == 0)
    def _init():
        sum_acc[...] = jnp.zeros_like(sum_acc)
        # Accumulators are f32 regardless of the input dtype, so -inf is safe.
        max_acc[...] = jnp.full_like(max_acc, -jnp.inf)

    def _accumulate(valid_in_block):
        # valid_in_block is a static Python int in [1, hw_tile].
        full = valid_in_block // 128          # fully-valid 128-lane slabs
        tail = valid_in_block - full * 128    # valid lanes in the boundary slab

        def load(g):
            return x_ref[:, :, g * 128:(g + 1) * 128].astype(jnp.float32)

        part_s = None
        part_m = None
        for g in range(full):                 # hot path: elementwise add/max only
            slab = load(g)
            part_s = slab if part_s is None else part_s + slab
            part_m = slab if part_m is None else jnp.maximum(part_m, slab)
        if tail:                              # boundary slab (last HW block only)
            slab = load(full)
            # HW padding columns are zero -> harmless for the sum path.
            part_s = slab if part_s is None else part_s + slab
            lane = jax.lax.broadcasted_iota(jnp.int32, slab.shape, dimension=2)
            slab_m = jnp.where(lane < tail, slab, -jnp.inf)
            part_m = slab_m if part_m is None else jnp.maximum(part_m, slab_m)

        sum_acc[...] += part_s
        max_acc[...] = jnp.maximum(max_acc[...], part_m)

    # Static: number of valid HW elements in the last block.
    last_valid = hw_valid - (num_hw_blocks - 1) * hw_tile
    if last_valid == hw_tile:
        _accumulate(hw_tile)                  # no HW padding anywhere: one hot path
    elif num_hw_blocks == 1:
        _accumulate(last_valid)               # single (padded) block
    else:
        @pl.when(k < num_hw_blocks - 1)
        def _steady():                        # steady state: fully unmasked
            _accumulate(hw_tile)

        @pl.when(k == num_hw_blocks - 1)
        def _last():                          # cold path: masked tail only
            _accumulate(last_valid)

    @pl.when(k == num_hw_blocks - 1)
    def _finalize():
        bt = sum_acc.shape[0]
        # Single cross-lane (XLU) reduce per batch tile.
        avg = jnp.sum(sum_acc[...], axis=-1) * (1.0 / float(hw_valid))   # (B, C)
        mx = jnp.max(max_acc[...], axis=-1)                              # (B, C)
        pooled = jnp.concatenate([avg, mx], axis=0)                      # (2B, C)
        w1t = w1t_ref[...].astype(jnp.float32)                           # (C, C)
        w2t = w2t_ref[...].astype(jnp.float32)                           # (C, C)
        hdn = jnp.maximum(
            jnp.dot(pooled, w1t, preferred_element_type=jnp.float32), 0.0)
        out = jnp.dot(hdn, w2t, preferred_element_type=jnp.float32)      # (2B, C)
        gate = jax.nn.sigmoid(out[:bt] + out[bt:])                       # (B, C)
        o_ref[...] = gate[None].astype(o_ref.dtype)


def _choose_tiles(n, c, hw, itemsize, target_bytes, *, max_slabs=64):
    """Pick (b_tile, n_pad, hw_tile, hw_pad).

    hw_tile is a multiple of 128 (lane-dense blocks) and is grown first, up to
    `max_slabs` 128-lane slabs (bounds the in-kernel unroll).  b_tile then grows
    to reach ~target_bytes per block, but is capped at ceil(n/2) so the parallel
    batch grid axis has >=2 tiles whenever n >= 2 (keeps both v7x TCs busy).
    """
    slab_bytes = c * 128 * itemsize                       # one (1, C, 128) slab
    slabs_whole = -(-hw // 128)                           # whole map, 128-rounded
    slabs = max(1, min(slabs_whole, max_slabs, target_bytes // slab_bytes))
    hw_tile = slabs * 128
    hw_pad = -(-hw // hw_tile) * hw_tile

    block_row_bytes = c * hw_tile * itemsize
    b_tile = max(1, target_bytes // block_row_bytes)
    if n >= 2:
        b_tile = min(b_tile, -(-n // 2))                  # >= 2 batch tiles
    b_tile = int(min(b_tile, n))
    n_pad = -(-n // b_tile) * b_tile
    return b_tile, n_pad, hw_tile, hw_pad


def _default_block_bytes():
    # ~4 MiB streams well on v5e/v6e; v7x's higher HBM bandwidth (vs the ~0.35us
    # per-grid-step overhead) wants ~6 MiB.  Double-buffered, both stay far under
    # the respective VMEM capacities.
    try:
        kind = jax.devices()[0].device_kind.lower()
    except Exception:
        kind = ""
    return 6 * 1024 * 1024 if "v7" in kind else 4 * 1024 * 1024


def channel_attention(x, w1, w2, *, target_block_bytes=None):
    """x: (N, C, H, W). w1, w2: (C, C) fc1/fc2 weights (PyTorch (out, in) layout).

    Returns the (N, C, 1, 1) sigmoid channel gate (same as ChannelAttention0.forward).
    """
    n, c, h, w = x.shape
    assert w1.shape == (c, c) and w2.shape == (c, c)
    hw = h * w
    itemsize = jnp.dtype(x.dtype).itemsize
    if target_block_bytes is None:
        target_block_bytes = _default_block_bytes()

    b_tile, n_pad, hw_tile, hw_pad = _choose_tiles(n, c, hw, itemsize,
                                                   target_block_bytes)
    num_hw_blocks = hw_pad // hw_tile
    n_tiles = n_pad // b_tile

    x_flat = x.reshape(n, c, hw)
    if (n_pad, hw_pad) != (n, hw):
        # Padded batch rows are pooled over zeros and pushed through the MLP, then
        # sliced off below -- wasted work only, NOT a correctness issue.
        x_flat = jnp.pad(x_flat, ((0, n_pad - n), (0, 0), (0, hw_pad - hw)))

    kernel = functools.partial(_channel_attention_kernel, hw_valid=hw,
                               hw_tile=hw_tile, num_hw_blocks=num_hw_blocks)

    # fc weights never change across the grid; for large C single-buffer them so
    # their dead second buffer doesn't compete with the streaming x blocks.
    if c >= 512:
        w_spec = pl.BlockSpec((c, c), lambda i, k: (0, 0),
                              pipeline_mode=pl.Buffered(1))
        w_bufs = 1
    else:
        w_spec = pl.BlockSpec((c, c), lambda i, k: (0, 0))
        w_bufs = 2

    w_itemsize = jnp.dtype(w1.dtype).itemsize
    vmem_est = (2 * b_tile * c * hw_tile * itemsize        # double-buffered x blocks
                + 2 * w_bufs * c * c * w_itemsize          # fc1 + fc2 weights
                + 2 * b_tile * c * 128 * 4                 # sum/max lane partials
                + 2 * 2 * b_tile * c * itemsize)           # tiny output blocks
    vmem_limit = min(max(32 * 1024 * 1024, int(vmem_est * 3 // 2)),
                     48 * 1024 * 1024)

    gate = pl.pallas_call(
        kernel,
        out_shape=jax.ShapeDtypeStruct((n_tiles, b_tile, c), x.dtype),
        grid=(n_tiles, num_hw_blocks),
        in_specs=[
            pl.BlockSpec((b_tile, c, hw_tile), lambda i, k: (i, 0, k)),
            w_spec,   # fc1^T, resident
            w_spec,   # fc2^T, resident
        ],
        out_specs=pl.BlockSpec((1, b_tile, c), lambda i, k: (i, 0, 0)),
        scratch_shapes=[
            pltpu.VMEM((b_tile, c, 128), jnp.float32),     # per-lane running sum
            pltpu.VMEM((b_tile, c, 128), jnp.float32),     # per-lane running max
        ],
        compiler_params=pltpu.CompilerParams(
            dimension_semantics=("parallel", "arbitrary"),
            vmem_limit_bytes=vmem_limit,
        ),
    )(x_flat, w1.T, w2.T)

    return gate.reshape(n_pad, c)[:n].reshape(n, c, 1, 1)


def _reference(x, w1, w2):
    # Pure-JAX reference mirroring the PyTorch forward.
    avg = jnp.mean(x, axis=(2, 3))                                # (N, C)
    mx = jnp.max(x, axis=(2, 3))                                  # (N, C)

    def mlp(v):
        return jnp.maximum(v @ w1.T, 0.0) @ w2.T                  # (N, C)

    return jax.nn.sigmoid(mlp(avg) + mlp(mx))[:, :, None, None]


def _torch_conv1x1_init(key, c_out, c_in):
    # PyTorch Conv2d default init: U(-1/sqrt(fan_in), 1/sqrt(fan_in)), fan_in = c_in.
    bound = 1.0 / math.sqrt(c_in)
    return jax.random.uniform(key, (c_out, c_in), minval=-bound, maxval=bound,
                              dtype=jnp.float32)


if __name__ == "__main__":
    key = jax.random.PRNGKey(0)
    kx, k1, k2, kx2, k3, k4 = jax.random.split(key, 6)

    # ---- case 1: whole feature map per block, 2 batch tiles --------------------
    N, C, H, W = 2, 64, 16, 16
    x = jax.random.normal(kx, (N, C, H, W), dtype=jnp.float32)
    w1 = _torch_conv1x1_init(k1, C, C)   # fc1: Conv2d(C, C, 1, bias=False)
    w2 = _torch_conv1x1_init(k2, C, C)   # fc2: Conv2d(C, C, 1, bias=False)

    out = jax.block_until_ready(channel_attention(x, w1, w2))
    ref = _reference(x, w1, w2)
    assert out.shape == (N, C, 1, 1)
    assert jnp.allclose(out, ref, atol=1e-4, rtol=1e-4), "mismatch vs reference (case 1)"

    # ---- case 2: non-128 HW + tiny block budget -> multi-block, masked tail ----
    N2, C2, H2, W2 = 3, 16, 13, 11
    x2 = jax.random.normal(kx2, (N2, C2, H2, W2), dtype=jnp.float32) - 5.0
    w1b = _torch_conv1x1_init(k3, C2, C2)
    w2b = _torch_conv1x1_init(k4, C2, C2)

    out2 = jax.block_until_ready(
        channel_attention(x2, w1b, w2b, target_block_bytes=8 * 1024))
    ref2 = _reference(x2, w1b, w2b)
    assert out2.shape == (N2, C2, 1, 1)
    assert jnp.allclose(out2, ref2, atol=1e-4, rtol=1e-4), "mismatch vs reference (case 2)"

    print("KERNEL_OK")
</pallas_src>

<mosaic_0001>
module attributes {stable_mosaic.version = 11 : i64} {
  func.func @_channel_attention_kernel(%arg0: i32, %arg1: i32, %arg2: memref<1x64x256xf32, #tpu.memory_space<vmem>>, %arg3: memref<64x64xf32, #tpu.memory_space<vmem>>, %arg4: memref<64x64xf32, #tpu.memory_space<vmem>>, %arg5: memref<1x1x64xf32, #tpu.memory_space<vmem>>, %arg6: memref<1x64x128xf32, #tpu.memory_space<vmem>>, %arg7: memref<1x64x128xf32, #tpu.memory_space<vmem>>) attributes {dimension_semantics = [#tpu.dimension_semantics<parallel>, #tpu.dimension_semantics<arbitrary>], iteration_bounds = array<i64: 2, 1>, scalar_prefetch = 0 : i64, scratch_operands = 2 : i64, tpu.core_type = #tpu.core_type<tc>, window_params = [{transform_indices = @transform_0, window_bounds = array<i64: 1, 64, 256>}, {pipeline_mode = #tpu.pipeline_mode<synchronous>, transform_indices = @transform_1, window_bounds = array<i64: 64, 64>}, {pipeline_mode = #tpu.pipeline_mode<synchronous>, transform_indices = @transform_2, window_bounds = array<i64: 64, 64>}, {transform_indices = @transform_3, window_bounds = array<i64: 1, 1, 64>}]} {
    %c0_i32 = arith.constant 0 : i32
    %0 = arith.cmpi eq, %arg1, %c0_i32 : i32
    %1 = arith.extui %0 : i1 to i32
    %c0_i32_0 = arith.constant 0 : i32
    %2 = arith.cmpi ne, %1, %c0_i32_0 : i32
    scf.if %2 {
      %cst = arith.constant 0.000000e+00 : f32
      %16 = vector.broadcast %cst : f32 to vector<1x64x128xf32>
      %c0_19 = arith.constant 0 : index
      %c0_20 = arith.constant 0 : index
      %c0_21 = arith.constant 0 : index
      %17 = vector.load %arg6[%c0_19, %c0_20, %c0_21] : memref<1x64x128xf32, #tpu.memory_space<vmem>>, vector<1x64x128xf32>
      tpu.vector_store %arg6[%c0_19, %c0_20, %c0_21], %16 {strides = array<i32>} : memref<1x64x128xf32, #tpu.memory_space<vmem>>, vector<1x64x128xf32>,
      %cst_22 = arith.constant 0xFF800000 : f32
      %18 = vector.broadcast %cst_22 : f32 to vector<1x64x128xf32>
      %c0_23 = arith.constant 0 : index
      %c0_24 = arith.constant 0 : index
      %c0_25 = arith.constant 0 : index
      %19 = vector.load %arg7[%c0_23, %c0_24, %c0_25] : memref<1x64x128xf32, #tpu.memory_space<vmem>>, vector<1x64x128xf32>
      tpu.vector_store %arg7[%c0_23, %c0_24, %c0_25], %18 {strides = array<i32>} : memref<1x64x128xf32, #tpu.memory_space<vmem>>, vector<1x64x128xf32>,
    } else {
    }
    %c0 = arith.constant 0 : index
    %c0_1 = arith.constant 0 : index
    %c0_2 = arith.constant 0 : index
    %3 = vector.load %arg2[%c0, %c0_1, %c0_2] : memref<1x64x256xf32, #tpu.memory_space<vmem>>, vector<1x64x128xf32>
    %c0_3 = arith.constant 0 : index
    %c0_4 = arith.constant 0 : index
    %c128 = arith.constant 128 : index
    %4 = vector.load %arg2[%c0_3, %c0_4, %c128] : memref<1x64x256xf32, #tpu.memory_space<vmem>>, vector<1x64x128xf32>
    %5 = arith.addf %3, %4 : vector<1x64x128xf32>
    %6 = arith.maximumf %3, %4 : vector<1x64x128xf32>
    %c0_5 = arith.constant 0 : index
    %c0_6 = arith.constant 0 : index
    %c0_7 = arith.constant 0 : index
    %7 = vector.load %arg6[%c0_5, %c0_6, %c0_7] : memref<1x64x128xf32, #tpu.memory_space<vmem>>, vector<1x64x128xf32>
    %8 = arith.addf %7, %5 : vector<1x64x128xf32>
    %c0_8 = arith.constant 0 : index
    %c0_9 = arith.constant 0 : index
    %c0_10 = arith.constant 0 : index
    %9 = vector.load %arg6[%c0_8, %c0_9, %c0_10] : memref<1x64x128xf32, #tpu.memory_space<vmem>>, vector<1x64x128xf32>
    tpu.vector_store %arg6[%c0_8, %c0_9, %c0_10], %8 {strides = array<i32>} : memref<1x64x128xf32, #tpu.memory_space<vmem>>, vector<1x64x128xf32>,
    %c0_11 = arith.constant 0 : index
    %c0_12 = arith.constant 0 : index
    %c0_13 = arith.constant 0 : index
    %10 = vector.load %arg7[%c0_11, %c0_12, %c0_13] : memref<1x64x128xf32, #tpu.memory_space<vmem>>, vector<1x64x128xf32>
    %11 = arith.maximumf %10, %6 : vector<1x64x128xf32>
    %c0_14 = arith.constant 0 : index
    %c0_15 = arith.constant 0 : index
    %c0_16 = arith.constant 0 : index
    %12 = vector.load %arg7[%c0_14, %c0_15, %c0_16] : memref<1x64x128xf32, #tpu.memory_space<vmem>>, vector<1x64x128xf32>
    tpu.vector_store %arg7[%c0_14, %c0_15, %c0_16], %11 {strides = array<i32>} : memref<1x64x128xf32, #tpu.memory_space<vmem>>, vector<1x64x128xf32>,
    %c0_i32_17 = arith.constant 0 : i32
    %13 = arith.cmpi eq, %arg1, %c0_i32_17 : i32
    %14 = arith.extui %13 : i1 to i32
    %c0_i32_18 = arith.constant 0 : i32
    %15 = arith.cmpi ne, %14, %c0_i32_18 : i32
    scf.if %15 {
      %c0_19 = arith.constant 0 : index
      %c0_20 = arith.constant 0 : index
      %c0_21 = arith.constant 0 : index
      %16 = vector.load %arg6[%c0_19, %c0_20, %c0_21] : memref<1x64x128xf32, #tpu.memory_space<vmem>>, vector<1x64x128xf32>
      %cst = arith.constant dense<0.000000e+00> : vector<1x64xf32>
      %17 = vector.multi_reduction <add>, %16, %cst [2] : vector<1x64x128xf32> to vector<1x64xf32>
      %cst_22 = arith.constant 3.906250e-03 : f32
      %18 = vector.broadcast %cst_22 : f32 to vector<1x64xf32>
      %19 = arith.mulf %17, %18 : vector<1x64xf32>
      %c0_23 = arith.constant 0 : index
      %c0_24 = arith.constant 0 : index
      %c0_25 = arith.constant 0 : index
      %20 = vector.load %arg7[%c0_23, %c0_24, %c0_25] : memref<1x64x128xf32, #tpu.memory_space<vmem>>, vector<1x64x128xf32>
      %cst_26 = arith.constant dense<0xFF800000> : vector<1x64xf32>
      %21 = vector.multi_reduction <maximumf>, %20, %cst_26 [2] : vector<1x64x128xf32> to vector<1x64xf32>
      %22 = tpu.concatenate %19, %21 in 0 : vector<1x64xf32>, vector<1x64xf32> -> vector<2x64xf32>
      %c0_27 = arith.constant 0 : index
      %c0_28 = arith.constant 0 : index
      %23 = vector.load %arg3[%c0_27, %c0_28] : memref<64x64xf32, #tpu.memory_space<vmem>>, vector<64x64xf32>
      %c0_29 = arith.constant 0 : index
      %c0_30 = arith.constant 0 : index
      %24 = vector.load %arg4[%c0_29, %c0_30] : memref<64x64xf32, #tpu.memory_space<vmem>>, vector<64x64xf32>
      %cst_31 = arith.constant dense<0.000000e+00> : vector<2x64xf32>
      %25 = tpu.matmul %22, %23, %cst_31 {dimension_numbers = #tpu.dot_dimension_numbers<[1], [0], [0], [1], [0, 0, 1, 1], [], []>} : vector<2x64xf32>, vector<64x64xf32>, vector<2x64xf32> -> vector<2x64xf32>
      %cst_32 = arith.constant 0.000000e+00 : f32
      %26 = vector.broadcast %cst_32 : f32 to vector<2x64xf32>
      %27 = arith.maximumf %25, %26 : vector<2x64xf32>
      %cst_33 = arith.constant dense<0.000000e+00> : vector<2x64xf32>
      %28 = tpu.matmul %27, %24, %cst_33 {dimension_numbers = #tpu.dot_dimension_numbers<[1], [0], [0], [1], [0, 0, 1, 1], [], []>} : vector<2x64xf32>, vector<64x64xf32>, vector<2x64xf32> -> vector<2x64xf32>
      %29 = vector.extract_strided_slice %28 {offsets = [0, 0], sizes = [1, 64], strides = [1, 1]} : vector<2x64xf32> to vector<1x64xf32>
      %30 = vector.extract_strided_slice %28 {offsets = [1, 0], sizes = [1, 64], strides = [1, 1]} : vector<2x64xf32> to vector<1x64xf32>
      %31 = arith.addf %29, %30 : vector<1x64xf32>
      %32 = arith.negf %31 : vector<1x64xf32>
      %33 = math.exp %32 : vector<1x64xf32>
      %cst_34 = arith.constant 1.000000e+00 : f32
      %34 = vector.broadcast %cst_34 : f32 to vector<1x64xf32>
      %35 = arith.addf %34, %33 : vector<1x64xf32>
      %36 = arith.divf %34, %35 : vector<1x64xf32>
      %37 = vector.shape_cast %36 : vector<1x64xf32> to vector<1x1x64xf32>
      %c0_35 = arith.constant 0 : index
      %c0_36 = arith.constant 0 : index
      %c0_37 = arith.constant 0 : index
      %38 = vector.load %arg5[%c0_35, %c0_36, %c0_37] : memref<1x1x64xf32, #tpu.memory_space<vmem>>, vector<1x1x64xf32>
      tpu.vector_store %arg5[%c0_35, %c0_36, %c0_37], %37 {strides = array<i32>} : memref<1x1x64xf32, #tpu.memory_space<vmem>>, vector<1x1x64xf32>,
    } else {
    }
    return
  }
  func.func @transform_0(%arg0: i32, %arg1: i32) -> (i32, i32, i32) {
    %c0_i32 = arith.constant 0 : i32
    %c0_i32_0 = arith.constant 0 : i32
    return %arg0, %c0_i32, %arg1 : i32, i32, i32
  }
  func.func @transform_1(%arg0: i32, %arg1: i32) -> (i32, i32) {
    %c0_i32 = arith.constant 0 : i32
    %c0_i32_0 = arith.constant 0 : i32
    %c0_i32_1 = arith.constant 0 : i32
    return %c0_i32, %c0_i32_0 : i32, i32
  }
  func.func @transform_2(%arg0: i32, %arg1: i32) -> (i32, i32) {
    %c0_i32 = arith.constant 0 : i32
    %c0_i32_0 = arith.constant 0 : i32
    %c0_i32_1 = arith.constant 0 : i32
    return %c0_i32, %c0_i32_0 : i32, i32
  }
  func.func @transform_3(%arg0: i32, %arg1: i32) -> (i32, i32, i32) {
    %c0_i32 = arith.constant 0 : i32
    %c0_i32_0 = arith.constant 0 : i32
    %c0_i32_1 = arith.constant 0 : i32
    return %arg0, %c0_i32, %c0_i32_0 : i32, i32, i32
  }
}

</mosaic_0001>

<llo_original>
// kernel: tpu_custom_call.1
$region0: #{tpu_custom_call.1}
  #allocation0 [shape = 'u32[]', space=smem, size = 0x4, offset = 0x4, fixed_abs, tag = 'smem constant byte address 0x4 - core index']
  #allocation1 [shape = 'u32[144,128]{1,0:T(1,128)}', space=vmem, size = 0x12000, scoped, tag = 'internal scratch']
  #allocation2 [shape = 'f32[1,64,128]{2,1,0:T(8,128)}', space=vmem, size = 0x8000, scoped, tag = 'scratch operand']
  #allocation3 [shape = 'f32[1,64,128]{2,1,0:T(8,128)}', space=vmem, size = 0x8000, scoped, tag = 'scratch operand']
  %s0 = inlined_call_operand.hbm [shape: f32[2,64,256], index: 0, kind: input, shape index: {}]
  %s1 = inlined_call_operand.hbm [shape: f32[64,64], index: 1, kind: input, shape index: {}]
  %s2 = inlined_call_operand.hbm [shape: f32[64,64], index: 2, kind: input, shape index: {}]
  %s3 = inlined_call_operand.hbm [shape: f32[2,1,64], index: 3, kind: output, shape index: {}]
  %s4 = sld [smem:[#allocation0]]
  $region65: #{tpu_custom_call.1} parent=0
    _
  %s6 = ssub.s32 1, %s4
  %s7 = scalar_select 0, %s6, %s4
  $region1: #{tpu_custom_call.1} parent=0
    #allocation4 [shape = 'u8[131072]{0}', space=vmem, size = 0x20000, scoped, tag = 'input window, operand 0']
    #allocation5 [shape = 's32[2]{0}', space=sflag, size = 0x8, scoped, tag = 'scoped memory for tpu_custom_call.1']
    #allocation6 [shape = 's32[2]{0}', space=sflag, size = 0x8, scoped, tag = 'scoped memory for tpu_custom_call.1']
    #allocation7 [shape = 'u8[32768]{0}', space=vmem, size = 0x8000, scoped, tag = 'input window, operand 1, single buffered']
    #allocation8 [shape = 's32[1]{0}', space=sflag, size = 0x4, scoped, tag = 'scoped memory for tpu_custom_call.1']
    #allocation9 [shape = 'u8[32768]{0}', space=vmem, size = 0x8000, scoped, tag = 'input window, operand 2, single buffered']
    #allocation10 [shape = 'u8[1024]{0}', space=vmem, size = 0x400, scoped, tag = 'output window, operand 0']
    %8 = vsyncpa [#allocation5], 0
    %s9 = scalar_lea.sflag [#allocation5], 1
    %10 = vsyncpa %s9, 0
    %11 = vsyncpa [#allocation8], 0
    %12 = vsyncpa [#allocation6], 0
    %s13 = scalar_lea.sflag [#allocation6], 1
    %14 = vsyncpa %s13, 0
    loop: start=0, step=1, limit=4
    $region2: #{tpu_custom_call.1} parent=1 // loop_pre_header
      _
    $region3: #{tpu_custom_call.1} parent=1 // loop_header
      %s16 = sphi 0, %s20
      %p17 = scmp.ge.s32.totalorder %s16, 4
      %s23 = sphi 0, %s35
      %s24 = sphi 0, %s31
      %s25 = sphi 0, %s23
      %s26 = sphi 0, %s24
      %s27 = sphi 0, %s25
      %s28 = sphi 0, %s26
      %s40 = sphi 0, %s42
      %s43 = sphi 0, %s40
      %s44 = sphi 0, %s43
      %s60 = sphi 0, %s44
      %s64 = sphi 0, %s64
      %s66 = sphi 0, %s64
      %s67 = sphi 0, %s66
      %s81 = sphi 0, %s67
      %s85 = sphi 0, %s85
      %s87 = sphi 0, %s85
      %s88 = sphi 0, %s87
      %s102 = sphi 0, %s88
      %s108 = sphi 0, %s110
      %s111 = sphi 0, %s108
      %s112 = sphi 0, %s111
      %s128 = sphi 0, %s112
    $region4: #{tpu_custom_call.1} parent=1 // loop_header_branch
      %19 = sbr.rel (%p17) target = $region8
    $region5: #{tpu_custom_call.1} parent=1 // loop_body
      %s21 = ssub.s32 %s16, 1
      %s22 = ssub.s32 %s16, 2
      %s29 = sadd.s32 1, %s24
      %p30 = scmp.ge.s32.totalorder %s29, 1
      %s31 = scalar_select %p30, 0, %s29
      %s32 = sadd.s32 1, %s23
      %s33 = scalar_select %p30, %s32, %s23
      %p34 = scmp.ge.s32.totalorder %s33, 2
      %s35 = scalar_select %p34, 0, %s33
      %s36 = ssub.s32 %s23, %s35
      %s37 = ssub.s32 %s24, %s31
      %s38 = sor.u32 %s36, %s37
      %p39 = scmp.eq.s32.totalorder %s38, 0
      %s41 = sadd.s32 %s40, 1
      %s42 = scalar_select %p39, %s40, %s41
      %p45 = pneg %p39
      %p46 = scmp.eq.s32.totalorder %s16, 1
      %p47 = por %p45, %p46
      %p48 = scmp.ne.s32.totalorder %s40, %s43
      %p49 = scmp.eq.s32.totalorder %s16, 0
      %p50 = por %p48, %p49
      %p51 = scmp.ne.s32.totalorder %s40, %s43
      %p52 = scmp.eq.s32.totalorder %s21, 1
      %p53 = por %p51, %p52
      %p54 = scmp.ne.s32.totalorder %s43, %s44
      %p55 = scmp.eq.s32.totalorder %s21, 0
      %p56 = por %p54, %p55
      %p57 = scmp.ne.s32.totalorder %s43, %s44
      %p58 = scmp.eq.s32.totalorder %s22, 1
      %p59 = por %p57, %p58
      %p61 = scmp.ne.s32.totalorder %s44, %s60
      %p62 = scmp.eq.s32.totalorder %s22, 0
      %p63 = por %p61, %p62
      %s65 = sadd.s32 %s64, 1
      %p68 = scmp.eq.s32.totalorder %s16, 1
      %p69 = scmp.ne.s32.totalorder %s64, %s66
      %p70 = scmp.eq.s32.totalorder %s16, 0
      %p71 = por %p69, %p70
      %p72 = scmp.ne.s32.totalorder %s64, %s66
      %p73 = scmp.eq.s32.totalorder %s21, 1
      %p74 = por %p72, %p73
      %p75 = scmp.ne.s32.totalorder %s66, %s67
      %p76 = scmp.eq.s32.totalorder %s21, 0
      %p77 = por %p75, %p76
      %p78 = scmp.ne.s32.totalorder %s66, %s67
      %p79 = scmp.eq.s32.totalorder %s22, 1
      %p80 = por %p78, %p79
      %p82 = scmp.ne.s32.totalorder %s67, %s81
      %p83 = scmp.eq.s32.totalorder %s22, 0
      %p84 = por %p82, %p83
      %s86 = sadd.s32 %s85, 1
      %p89 = scmp.eq.s32.totalorder %s16, 1
      %p90 = scmp.ne.s32.totalorder %s85, %s87
      %p91 = scmp.eq.s32.totalorder %s16, 0
      %p92 = por %p90, %p91
      %p93 = scmp.ne.s32.totalorder %s85, %s87
      %p94 = scmp.eq.s32.totalorder %s21, 1
      %p95 = por %p93, %p94
      %p96 = scmp.ne.s32.totalorder %s87, %s88
      %p97 = scmp.eq.s32.totalorder %s21, 0
      %p98 = por %p96, %p97
      %p99 = scmp.ne.s32.totalorder %s87, %s88
      %p100 = scmp.eq.s32.totalorder %s22, 1
      %p101 = por %p99, %p100
      %p103 = scmp.ne.s32.totalorder %s88, %s102
      %p104 = scmp.eq.s32.totalorder %s22, 0
      %p105 = por %p103, %p104
      %s106 = ssub.s32 %s23, %s35
      %p107 = scmp.eq.s32.totalorder %s106, 0
      %s109 = sadd.s32 %s108, 1
      %s110 = scalar_select %p107, %s108, %s109
      %p113 = pneg %p107
      %p114 = scmp.eq.s32.totalorder %s16, 1
      %p115 = por %p113, %p114
      %p116 = scmp.ne.s32.totalorder %s108, %s111
      %p117 = scmp.eq.s32.totalorder %s16, 0
      %p118 = por %p116, %p117
      %p119 = scmp.ne.s32.totalorder %s108, %s111
      %p120 = scmp.eq.s32.totalorder %s21, 1
      %p121 = por %p119, %p120
      %p122 = scmp.ne.s32.totalorder %s111, %s112
      %p123 = scmp.eq.s32.totalorder %s21, 0
      %p124 = por %p122, %p123
      %p125 = scmp.ne.s32.totalorder %s111, %s112
      %p126 = scmp.eq.s32.totalorder %s22, 1
      %p127 = por %p125, %p126
      %p129 = scmp.ne.s32.totalorder %s112, %s128
      %p130 = scmp.eq.s32.totalorder %s22, 0
      %p131 = por %p129, %p130
      %p132 = scmp.le.s32.totalorder 1, %s16
      %p133 = scmp.lt.s32.totalorder %s16, 3
      %p134 = pnand %p132, %p133
      %p135 = pneg %p134
      // Predicated region
      $region9: #{tpu_custom_call.1} parent=5 // pred_check
        _
      $region10: #{tpu_custom_call.1} parent=5 // pred_check_branch
        %137 = sbr.rel (%p134) target = $region12
      $region11: #{tpu_custom_call.1} parent=5 // pred_region
        %s138 = ssub.s32 %s16, 1
        // Predicated region
        $region13: #{tpu_custom_call.1} parent=11 // pred_check
          %p139 = pneg %p77
        $region14: #{tpu_custom_call.1} parent=11 // pred_check_branch
          %141 = sbr.rel (%p139) target = $region16
        $region15: #{tpu_custom_call.1} parent=11 // pred_region
          %s143 = ssub.s32 1024, 1024
          %144 = vsyncadd [#allocation8], %s143
          %s145 = sshll.u32 [#allocation7], 4
          %s146 = int_to_ptr.vmem [resolvable:$true] %s145
          %151 = dma.hbm_to_vmem [thread:$0]  %s1, 1024, %s146, [#allocation8], 128, 128, 8
        $region16: #{tpu_custom_call.1} parent=11 // pred_fallthru
          _
        // Predicated region
        $region17: #{tpu_custom_call.1} parent=11 // pred_check
          %p152 = pneg %p98
        $region18: #{tpu_custom_call.1} parent=11 // pred_check_branch
          %154 = sbr.rel (%p152) target = $region20
        $region19: #{tpu_custom_call.1} parent=11 // pred_region
          %s156 = ssub.s32 1024, 1024
          %157 = vsyncadd [#allocation8], %s156
          %s158 = sshll.u32 [#allocation9], 4
          %s159 = int_to_ptr.vmem [resolvable:$true] %s158
          %164 = dma.hbm_to_vmem [thread:$0]  %s2, 1024, %s159, [#allocation8], 128, 128, 8
        $region20: #{tpu_custom_call.1} parent=11 // pred_fallthru
          _
      $region12: #{tpu_custom_call.1} parent=5 // pred_fallthru
        _
      %p165 = scmp.lt.s32.totalorder %s16, 2
      // Predicated region
      $region21: #{tpu_custom_call.1} parent=5 // pred_check
        %p166 = pneg %p165
      $region22: #{tpu_custom_call.1} parent=5 // pred_check_branch
        %168 = sbr.rel (%p166) target = $region24
      $region23: #{tpu_custom_call.1} parent=5 // pred_region
        // Predicated region
        $region25: #{tpu_custom_call.1} parent=23 // pred_check
          %p169 = pneg %p50
        $region26: #{tpu_custom_call.1} parent=23 // pred_check_branch
          %171 = sbr.rel (%p169) target = $region28
        $region27: #{tpu_custom_call.1} parent=23 // pred_region
          %s172 = sand.u32 %s40, 1
          %s173 = scalar_lea.sflag [#allocation5], %s172
          %s174 = sand.u32 %s40, 1
          %s175 = smul.addr %s174, 128
          %s176 = scalar_lea.vmem [#allocation4], %s175
          %s177 = smul.u32 2, %s24
          %s179 = ssub.s32 2048, 2048
          %180 = vsyncadd %s173, %s179
          %s181 = smul.addr %s23, 16
          %s182 = sadd.s32 %s177, %s181
          %s183 = smul.addr %s182, 128
          %s184 = scalar_lea.hbm %s0, %s183
          %s185 = sshll.u32 %s176, 4
          %s186 = int_to_ptr.vmem [resolvable:$true] %s185
          %191 = dma.hbm_to_vmem [thread:$0]  %s184, 2048, %s186, %s173, 256, 256, 16
        $region28: #{tpu_custom_call.1} parent=23 // pred_fallthru
          _
      $region24: #{tpu_custom_call.1} parent=5 // pred_fallthru
        _
      %p192 = scmp.le.s32.totalorder 1, %s16
      %p193 = scmp.lt.s32.totalorder %s16, 3
      %p194 = pnand %p192, %p193
      %p195 = pneg %p194
      // Predicated region
      $region29: #{tpu_custom_call.1} parent=5 // pred_check
        _
      $region30: #{tpu_custom_call.1} parent=5 // pred_check_branch
        %197 = sbr.rel (%p194) target = $region32
      $region31: #{tpu_custom_call.1} parent=5 // pred_region
        %s198 = ssub.s32 %s16, 1
        %s199 = sand.u32 %s43, 1
        %s200 = scalar_lea.sflag [#allocation5], %s199
        %s201 = sand.u32 %s43, 1
        %s202 = smul.addr %s201, 128
        %s203 = scalar_lea.vmem [#allocation4], %s202
        // Predicated region
        $region33: #{tpu_custom_call.1} parent=31 // pred_check
          %p204 = pneg %p56
        $region34: #{tpu_custom_call.1} parent=31 // pred_check_branch
          %206 = sbr.rel (%p204) target = $region36
        $region35: #{tpu_custom_call.1} parent=31 // pred_region
          %207 = dma.done %s200, 2048
        $region36: #{tpu_custom_call.1} parent=31 // pred_fallthru
          _
        // Predicated region
        $region37: #{tpu_custom_call.1} parent=31 // pred_check
          %p208 = pneg %p77
        $region38: #{tpu_custom_call.1} parent=31 // pred_check_branch
          %210 = sbr.rel (%p208) target = $region40
        $region39: #{tpu_custom_call.1} parent=31 // pred_region
          %211 = dma.done [#allocation8], 1024
        $region40: #{tpu_custom_call.1} parent=31 // pred_fallthru
          _
        // Predicated region
        $region41: #{tpu_custom_call.1} parent=31 // pred_check
          %p212 = pneg %p98
        $region42: #{tpu_custom_call.1} parent=31 // pred_check_branch
          %214 = sbr.rel (%p212) target = $region44
        $region43: #{tpu_custom_call.1} parent=31 // pred_region
          %215 = dma.done [#allocation8], 1024
        $region44: #{tpu_custom_call.1} parent=31 // pred_fallthru
          _
        %s216 = sand.u32 %s43, 1
        %s217 = scalar_lea.sflag [#allocation5], %s216
        %s218 = sand.u32 %s43, 1
        %s219 = smul.addr %s218, 128
        %s220 = scalar_lea.vmem [#allocation4], %s219
        %p221 = pneg %p56
        %p222 = pneg %p53
        %p223 = pneg %p77
        %p224 = pneg %p74
        %p225 = pneg %p98
        %p226 = pneg %p95
        %p227 = pneg %p124
        %p228 = pneg %p121
        %s229 = sand.u32 %s111, 1
        %s230 = scalar_lea.sflag [#allocation6], %s229
        %s231 = sand.u32 %s111, 1
        %s232 = scalar_lea.vmem [#allocation10], %s231
        %s233 = smul.u32 2, %s26
        %p234 = scmp.eq.s32.totalorder %s26, 0
        // Predicated region
        $region45: #{tpu_custom_call.1} parent=31 // pred_check
          %p235 = pneg %p234
        $region46: #{tpu_custom_call.1} parent=31 // pred_check_branch
          %237 = sbr.rel (%p235) target = $region48
        $region47: #{tpu_custom_call.1} parent=31 // pred_region
          %238 = vst [vmem:[#allocation2] sm:$0xff] 0.0
          %239 = vst [vmem:[#allocation2 + $0x8] sm:$0xff] 0.0
          %240 = vst [vmem:[#allocation2 + $0x10] sm:$0xff] 0.0
          %241 = vst [vmem:[#allocation2 + $0x18] sm:$0xff] 0.0
          %242 = vst [vmem:[#allocation2 + $0x20] sm:$0xff] 0.0
          %243 = vst [vmem:[#allocation2 + $0x28] sm:$0xff] 0.0
          %244 = vst [vmem:[#allocation2 + $0x30] sm:$0xff] 0.0
          %245 = vst [vmem:[#allocation2 + $0x38] sm:$0xff] 0.0
          %246 = vst [vmem:[#allocation3] sm:$0xff] -inf
          %247 = vst [vmem:[#allocation3 + $0x8] sm:$0xff] -inf
          %248 = vst [vmem:[#allocation3 + $0x10] sm:$0xff] -inf
          %249 = vst [vmem:[#allocation3 + $0x18] sm:$0xff] -inf
          %250 = vst [vmem:[#allocation3 + $0x20] sm:$0xff] -inf
          %251 = vst [vmem:[#allocation3 + $0x28] sm:$0xff] -inf
          %252 = vst [vmem:[#allocation3 + $0x30] sm:$0xff] -inf
          %253 = vst [vmem:[#allocation3 + $0x38] sm:$0xff] -inf
        $region48: #{tpu_custom_call.1} parent=31 // pred_fallthru
          _
        %v254 = vld [vmem:[%s203] sm:$0xff]
        %v255 = vld [vmem:[%s203 + $0x10] sm:$0xff]
        %v256 = vld [vmem:[%s203 + $0x20] sm:$0xff]
        %v257 = vld [vmem:[%s203 + $0x30] sm:$0xff]
        %v258 = vld [vmem:[%s203 + $0x40] sm:$0xff]
        %v259 = vld [vmem:[%s203 + $0x50] sm:$0xff]
        %v260 = vld [vmem:[%s203 + $0x60] sm:$0xff]
        %v261 = vld [vmem:[%s203 + $0x70] sm:$0xff]
        %v262 = vld [vmem:[%s203 + $0x8] sm:$0xff]
        %v263 = vld [vmem:[%s203 + $0x18] sm:$0xff]
        %v264 = vld [vmem:[%s203 + $0x28] sm:$0xff]
        %v265 = vld [vmem:[%s203 + $0x38] sm:$0xff]
        %v266 = vld [vmem:[%s203 + $0x48] sm:$0xff]
        %v267 = vld [vmem:[%s203 + $0x58] sm:$0xff]
        %v268 = vld [vmem:[%s203 + $0x68] sm:$0xff]
        %v269 = vld [vmem:[%s203 + $0x78] sm:$0xff]
        %v270 = vadd.f32 %v254, %v262
        %v271 = vadd.f32 %v255, %v263
        %v272 = vadd.f32 %v256, %v264
        %v273 = vadd.f32 %v257, %v265
        %v274 = vadd.f32 %v258, %v266
        %v275 = vadd.f32 %v259, %v267
        %v276 = vadd.f32 %v260, %v268
        %v277 = vadd.f32 %v261, %v269
        %v278 = vmax.f32 %v254, %v262
        %v279 = vmax.f32 %v255, %v263
        %v280 = vmax.f32 %v256, %v264
        %v281 = vmax.f32 %v257, %v265
        %v282 = vmax.f32 %v258, %v266
        %v283 = vmax.f32 %v259, %v267
        %v284 = vmax.f32 %v260, %v268
        %v285 = vmax.f32 %v261, %v269
        %v286 = vld [vmem:[#allocation2] sm:$0xff]
        %v287 = vld [vmem:[#allocation2 + $0x8] sm:$0xff]
        %v288 = vld [vmem:[#allocation2 + $0x10] sm:$0xff]
        %v289 = vld [vmem:[#allocation2 + $0x18] sm:$0xff]
        %v290 = vld [vmem:[#allocation2 + $0x20] sm:$0xff]
        %v291 = vld [vmem:[#allocation2 + $0x28] sm:$0xff]
        %v292 = vld [vmem:[#allocation2 + $0x30] sm:$0xff]
        %v293 = vld [vmem:[#allocation2 + $0x38] sm:$0xff]
        %v294 = vadd.f32 %v286, %v270
        %v295 = vadd.f32 %v287, %v271
        %v296 = vadd.f32 %v288, %v272
        %v297 = vadd.f32 %v289, %v273
        %v298 = vadd.f32 %v290, %v274
        %v299 = vadd.f32 %v291, %v275
        %v300 = vadd.f32 %v292, %v276
        %v301 = vadd.f32 %v293, %v277
        %302 = vst [vmem:[#allocation2] sm:$0xff] %v294
        %303 = vst [vmem:[#allocation2 + $0x8] sm:$0xff] %v295
        %304 = vst [vmem:[#allocation2 + $0x10] sm:$0xff] %v296
        %305 = vst [vmem:[#allocation2 + $0x18] sm:$0xff] %v297
        %306 = vst [vmem:[#allocation2 + $0x20] sm:$0xff] %v298
        %307 = vst [vmem:[#allocation2 + $0x28] sm:$0xff] %v299
        %308 = vst [vmem:[#allocation2 + $0x30] sm:$0xff] %v300
        %309 = vst [vmem:[#allocation2 + $0x38] sm:$0xff] %v301
        %v310 = vld [vmem:[#allocation3] sm:$0xff]
        %v311 = vld [vmem:[#allocation3 + $0x8] sm:$0xff]
        %v312 = vld [vmem:[#allocation3 + $0x10] sm:$0xff]
        %v313 = vld [vmem:[#allocation3 + $0x18] sm:$0xff]
        %v314 = vld [vmem:[#allocation3 + $0x20] sm:$0xff]
        %v315 = vld [vmem:[#allocation3 + $0x28] sm:$0xff]
        %v316 = vld [vmem:[#allocation3 + $0x30] sm:$0xff]
        %v317 = vld [vmem:[#allocation3 + $0x38] sm:$0xff]
        %v318 = vmax.f32 %v310, %v278
        %v319 = vmax.f32 %v311, %v279
        %v320 = vmax.f32 %v312, %v280
        %v321 = vmax.f32 %v313, %v281
        %v322 = vmax.f32 %v314, %v282
        %v323 = vmax.f32 %v315, %v283
        %v324 = vmax.f32 %v316, %v284
        %v325 = vmax.f32 %v317, %v285
        %326 = vst [vmem:[#allocation3] sm:$0xff] %v318
        %327 = vst [vmem:[#allocation3 + $0x8] sm:$0xff] %v319
        %328 = vst [vmem:[#allocation3 + $0x10] sm:$0xff] %v320
        %329 = vst [vmem:[#allocation3 + $0x18] sm:$0xff] %v321
        %330 = vst [vmem:[#allocation3 + $0x20] sm:$0xff] %v322
        %331 = vst [vmem:[#allocation3 + $0x28] sm:$0xff] %v323
        %332 = vst [vmem:[#allocation3 + $0x30] sm:$0xff] %v324
        %333 = vst [vmem:[#allocation3 + $0x38] sm:$0xff] %v325
        // Predicated region
        $region49: #{tpu_custom_call.1} parent=31 // pred_check
          %p334 = pneg %p234
        $region50: #{tpu_custom_call.1} parent=31 // pred_check_branch
          %336 = sbr.rel (%p334) target = $region52
        $region51: #{tpu_custom_call.1} parent=31 // pred_region
          %v337 = vld [vmem:[#allocation2] sm:$0xff]
          %v338 = vld [vmem:[#allocation2 + $0x8] sm:$0xff]
          %v339 = vld [vmem:[#allocation2 + $0x10] sm:$0xff]
          %v340 = vld [vmem:[#allocation2 + $0x18] sm:$0xff]
          %v341 = vld [vmem:[#allocation2 + $0x20] sm:$0xff]
          %v342 = vld [vmem:[#allocation2 + $0x28] sm:$0xff]
          %v343 = vld [vmem:[#allocation2 + $0x30] sm:$0xff]
          %v344 = vld [vmem:[#allocation2 + $0x38] sm:$0xff]
          %345 = vadd.xlane.f32.xlu0 %v337
          %v346 = vpop.xlane.xlu0 %345
          %347 = vadd.xlane.f32.xlu0 %v338
          %v348 = vpop.xlane.xlu0 %347
          %349 = vadd.xlane.f32.xlu0 %v339
          %v350 = vpop.xlane.xlu0 %349
          %351 = vadd.xlane.f32.xlu0 %v340
          %v352 = vpop.xlane.xlu0 %351
          %353 = vadd.xlane.f32.xlu0 %v341
          %v354 = vpop.xlane.xlu0 %353
          %355 = vadd.xlane.f32.xlu0 %v342
          %v356 = vpop.xlane.xlu0 %355
          %357 = vadd.xlane.f32.xlu0 %v343
          %v358 = vpop.xlane.xlu0 %357
          %359 = vadd.xlane.f32.xlu0 %v344
          %v360 = vpop.xlane.xlu0 %359
          %v361 = vmul.f32 %v346, 0.00390625
          %v362 = vmul.f32 %v348, 0.00390625
          %v363 = vmul.f32 %v350, 0.00390625
          %v364 = vmul.f32 %v352, 0.00390625
          %v365 = vmul.f32 %v354, 0.00390625
          %v366 = vmul.f32 %v356, 0.00390625
          %v367 = vmul.f32 %v358, 0.00390625
          %v368 = vmul.f32 %v360, 0.00390625
          %v369 = vld [vmem:[#allocation3] sm:$0xff]
          %v370 = vld [vmem:[#allocation3 + $0x8] sm:$0xff]
          %v371 = vld [vmem:[#allocation3 + $0x10] sm:$0xff]
          %v372 = vld [vmem:[#allocation3 + $0x18] sm:$0xff]
          %v373 = vld [vmem:[#allocation3 + $0x20] sm:$0xff]
          %v374 = vld [vmem:[#allocation3 + $0x28] sm:$0xff]
          %v375 = vld [vmem:[#allocation3 + $0x30] sm:$0xff]
          %v376 = vld [vmem:[#allocation3 + $0x38] sm:$0xff]
          %377 = vmax.xlane.f32.xlu0 %v369
          %v378 = vpop.xlane.xlu0 %377
          %379 = vmax.xlane.f32.xlu0 %v370
          %v380 = vpop.xlane.xlu0 %379
          %381 = vmax.xlane.f32.xlu0 %v371
          %v382 = vpop.xlane.xlu0 %381
          %383 = vmax.xlane.f32.xlu0 %v372
          %v384 = vpop.xlane.xlu0 %383
          %385 = vmax.xlane.f32.xlu0 %v373
          %v386 = vpop.xlane.xlu0 %385
          %387 = vmax.xlane.f32.xlu0 %v374
          %v388 = vpop.xlane.xlu0 %387
          %389 = vmax.xlane.f32.xlu0 %v375
          %v390 = vpop.xlane.xlu0 %389
          %391 = vmax.xlane.f32.xlu0 %v376
          %v392 = vpop.xlane.xlu0 %391
          %v401 = vlaneseq
          %v402 = vand.u32 %v401, 127
          %v403 = vlaneseq
          %v404 = vshrl.u32 %v403, 7
          %v405 = vsub.s32 %v402, %v404
          %v406 = vrot.slane %v361, %v405
          %v407 = vadd.s32 %v402, 4294967288
          %v408 = vlaneseq
          %v409 = vshrl.u32 %v408, 7
          %v410 = vsub.s32 %v407, %v409
          %v411 = vrot.slane %v362, %v410
          %vm412 = vcmask 130112
          %v413 = vsel %vm412, %v411, %v406
          %v414 = vadd.s32 %v402, 4294967280
          %v415 = vlaneseq
          %v416 = vshrl.u32 %v415, 7
          %v417 = vsub.s32 %v414, %v416
          %v418 = vrot.slane %v363, %v417
          %vm419 = vcmask 195712
          %v420 = vsel %vm419, %v418, %v413
          %v421 = vadd.s32 %v402, 4294967272
          %v422 = vlaneseq
          %v423 = vshrl.u32 %v422, 7
          %v424 = vsub.s32 %v421, %v423
          %v425 = vrot.slane %v364, %v424
          %vm426 = vcmask 261312
          %v427 = vsel %vm426, %v425, %v420
          %v428 = vadd.s32 %v402, 4294967264
          %v429 = vlaneseq
          %v430 = vshrl.u32 %v429, 7
          %v431 = vsub.s32 %v428, %v430
          %v432 = vrot.slane %v365, %v431
          %vm433 = vcmask 326912
          %v434 = vsel %vm433, %v432, %v427
          %v435 = vadd.s32 %v402, 4294967256
          %v436 = vlaneseq
          %v437 = vshrl.u32 %v436, 7
          %v438 = vsub.s32 %v435, %v437
          %v439 = vrot.slane %v366, %v438
          %vm440 = vcmask 392512
          %v441 = vsel %vm440, %v439, %v434
          %v442 = vadd.s32 %v402, 4294967248
          %v443 = vlaneseq
          %v444 = vshrl.u32 %v443, 7
          %v445 = vsub.s32 %v442, %v444
          %v446 = vrot.slane %v367, %v445
          %vm447 = vcmask 458112
          %v448 = vsel %vm447, %v446, %v441
          %v449 = vadd.s32 %v402, 4294967240
          %v450 = vlaneseq
          %v451 = vshrl.u32 %v450, 7
          %v452 = vsub.s32 %v449, %v451
          %v453 = vrot.slane %v368, %v452
          %vm454 = vcmask 523712
          %v455 = vsel %vm454, %v453, %v448
          %v465 = vlaneseq
          %v466 = vshrl.u32 %v465, 7
          %v467 = vsub.s32 %v402, %v466
          %v468 = vrot.slane %v378, %v467
          %v469 = vlaneseq
          %v470 = vshrl.u32 %v469, 7
          %v471 = vsub.s32 %v407, %v470
          %v472 = vrot.slane %v380, %v471
          %v473 = vsel %vm412, %v472, %v468
          %v474 = vlaneseq
          %v475 = vshrl.u32 %v474, 7
          %v476 = vsub.s32 %v414, %v475
          %v477 = vrot.slane %v382, %v476
          %v478 = vsel %vm419, %v477, %v473
          %v479 = vlaneseq
          %v480 = vshrl.u32 %v479, 7
          %v481 = vsub.s32 %v421, %v480
          %v482 = vrot.slane %v384, %v481
          %v483 = vsel %vm426, %v482, %v478
          %v484 = vlaneseq
          %v485 = vshrl.u32 %v484, 7
          %v486 = vsub.s32 %v428, %v485
          %v487 = vrot.slane %v386, %v486
          %v488 = vsel %vm433, %v487, %v483
          %v489 = vlaneseq
          %v490 = vshrl.u32 %v489, 7
          %v491 = vsub.s32 %v435, %v490
          %v492 = vrot.slane %v388, %v491
          %v493 = vsel %vm440, %v492, %v488
          %v494 = vlaneseq
          %v495 = vshrl.u32 %v494, 7
          %v496 = vsub.s32 %v442, %v495
          %v497 = vrot.slane %v390, %v496
          %v498 = vsel %vm447, %v497, %v493
          %v499 = vlaneseq
          %v500 = vshrl.u32 %v499, 7
          %v501 = vsub.s32 %v449, %v500
          %v502 = vrot.slane %v392, %v501
          %v503 = vsel %vm454, %v502, %v498
          %vm505 = vcmask 1040384
          %v506 = vsel %vm505, %v455, %v503
          %v507 = vld [vmem:[#allocation7] sm:$0xff]
          %v508 = vld [vmem:[#allocation7 + $0x8] sm:$0xff]
          %v509 = vld [vmem:[#allocation7 + $0x10] sm:$0xff]
          %v510 = vld [vmem:[#allocation7 + $0x18] sm:$0xff]
          %v511 = vld [vmem:[#allocation7 + $0x20] sm:$0xff]
          %v512 = vld [vmem:[#allocation7 + $0x28] sm:$0xff]
          %v513 = vld [vmem:[#allocation7 + $0x30] sm:$0xff]
          %v514 = vld [vmem:[#allocation7 + $0x38] sm:$0xff]
          %v515 = vld [vmem:[#allocation9] sm:$0xff]
          %v516 = vld [vmem:[#allocation9 + $0x8] sm:$0xff]
          %v517 = vld [vmem:[#allocation9 + $0x10] sm:$0xff]
          %v518 = vld [vmem:[#allocation9 + $0x18] sm:$0xff]
          %v519 = vld [vmem:[#allocation9 + $0x20] sm:$0xff]
          %v520 = vld [vmem:[#allocation9 + $0x28] sm:$0xff]
          %v521 = vld [vmem:[#allocation9 + $0x30] sm:$0xff]
          %v522 = vld [vmem:[#allocation9 + $0x38] sm:$0xff]
          %vm523 = vcmask 523264
          %v525 = vsel %vm523, %v506, 0
          %527 = vmatprep.subr.mxu0 0.0
          %528 = vmatpush1.msra.mxu0 %v507
          %529 = vmatprep.subr.mxu0 0.0
          %530 = vmatpush1.msra.mxu0 %v508
          %531 = vmatprep.subr.mxu0 0.0
          %532 = vmatpush1.msra.mxu0 %v509
          %533 = vmatprep.subr.mxu0 0.0
          %534 = vmatpush1.msra.mxu0 %v510
          %535 = vmatprep.subr.mxu0 0.0
          %536 = vmatpush1.msra.mxu0 %v511
          %537 = vmatprep.subr.mxu0 0.0
          %538 = vmatpush1.msra.mxu0 %v512
          %539 = vmatprep.subr.mxu0 0.0
          %540 = vmatpush1.msra.mxu0 %v513
          %541 = vmatprep.subr.mxu0 0.0
          %542 = vmatpush1.msra.mxu0 %v514
          %543 = vmatprep.subr.mxu0 0.0
          %544 = vmatpush1.msra.mxu0 0.0
          %545 = vmatprep.subr.mxu0 0.0
          %546 = vmatpush1.msra.mxu0 0.0
          %547 = vmatprep.subr.mxu0 0.0
          %548 = vmatpush1.msra.mxu0 0.0
          %549 = vmatprep.subr.mxu0 0.0
          %550 = vmatpush1.msra.mxu0 0.0
          %551 = vmatprep.subr.mxu0 0.0
          %552 = vmatpush1.msra.mxu0 0.0
          %553 = vmatprep.subr.mxu0 0.0
          %554 = vmatpush1.msra.mxu0 0.0
          %555 = vmatprep.subr.mxu0 0.0
          %556 = vmatpush1.msra.mxu0 0.0
          %557 = vmatprep.subr.mxu0 0.0
          %558 = vmatpush1.msra.mxu0 0.0
          %559 = vmatprep.subr.mxu0 0.0
          %560 = vmatpush1.msra.mxu0 0.0
          %561 = vmatprep.subr.mxu0 0.0
          %562 = vmatpush1.msra.mxu0 0.0
          %563 = vmatprep.subr.mxu0 0.0
          %564 = vmatpush1.msra.mxu0 0.0
          %565 = vmatprep.subr.mxu0 0.0
          %566 = vmatpush1.msra.mxu0 0.0
          %567 = vmatprep.subr.mxu0 0.0
          %568 = vmatpush1.msra.mxu0 0.0
          %569 = vmatprep.subr.mxu0 0.0
          %570 = vmatpush1.msra.mxu0 0.0
          %571 = vmatprep.subr.mxu0 0.0
          %572 = vmatpush1.msra.mxu0 0.0
          %573 = vmatprep.subr.mxu0 0.0
          %574 = vmatpush1.msra.mxu0 0.0
          %575 = vmatprep.subr.mxu0 0.0
          %576 = vmatpush1.msra.mxu0 0.0
          %577 = vmatprep.subr.mxu0 0.0
          %578 = vmatpush1.msra.mxu0 0.0
          %579 = vmatprep.subr.mxu0 0.0
          %580 = vmatpush1.msra.mxu0 0.0
          %581 = vmatprep.subr.mxu0 0.0
          %582 = vmatpush1.msra.mxu0 0.0
          %583 = vmatprep.subr.mxu0 0.0
          %584 = vmatpush1.msra.mxu0 0.0
          %585 = vmatprep.subr.mxu0 0.0
          %586 = vmatpush1.msra.mxu0 0.0
          %587 = vmatprep.subr.mxu0 0.0
          %588 = vmatpush1.msra.mxu0 0.0
          %589 = vmatprep.subr.mxu0 0.0
          %590 = vmatpush1.msra.mxu0 0.0
          %591 = vmatprep.mubr.f32.mxu0 0.0
          %592 = vmatmul.mubr.f32.gmra.mrb[0].mxu0 %v525
          %v593 = vpop.f32.mrb[0].mxu0
          %v594 = vadd.f32 0.0, %v593
          %v595 = vpop.f32.mrb[0].mxu0
          %596 = vdwg.mxu0
          %v597 = vmax.f32 %v594, 0.0
          %v599 = vsel %vm523, %v597, 0
          %601 = vmatprep.subr.mxu0 0.0
          %602 = vmatpush1.msra.mxu0 %v515
          %603 = vmatprep.subr.mxu0 0.0
          %604 = vmatpush1.msra.mxu0 %v516
          %605 = vmatprep.subr.mxu0 0.0
          %606 = vmatpush1.msra.mxu0 %v517
          %607 = vmatprep.subr.mxu0 0.0
          %608 = vmatpush1.msra.mxu0 %v518
          %609 = vmatprep.subr.mxu0 0.0
          %610 = vmatpush1.msra.mxu0 %v519
          %611 = vmatprep.subr.mxu0 0.0
          %612 = vmatpush1.msra.mxu0 %v520
          %613 = vmatprep.subr.mxu0 0.0
          %614 = vmatpush1.msra.mxu0 %v521
          %615 = vmatprep.subr.mxu0 0.0
          %616 = vmatpush1.msra.mxu0 %v522
          %617 = vmatprep.subr.mxu0 0.0
          %618 = vmatpush1.msra.mxu0 0.0
          %619 = vmatprep.subr.mxu0 0.0
          %620 = vmatpush1.msra.mxu0 0.0
          %621 = vmatprep.subr.mxu0 0.0
          %622 = vmatpush1.msra.mxu0 0.0
          %623 = vmatprep.subr.mxu0 0.0
          %624 = vmatpush1.msra.mxu0 0.0
          %625 = vmatprep.subr.mxu0 0.0
          %626 = vmatpush1.msra.mxu0 0.0
          %627 = vmatprep.subr.mxu0 0.0
          %628 = vmatpush1.msra.mxu0 0.0
          %629 = vmatprep.subr.mxu0 0.0
          %630 = vmatpush1.msra.mxu0 0.0
          %631 = vmatprep.subr.mxu0 0.0
          %632 = vmatpush1.msra.mxu0 0.0
          %633 = vmatprep.subr.mxu0 0.0
          %634 = vmatpush1.msra.mxu0 0.0
          %635 = vmatprep.subr.mxu0 0.0
          %636 = vmatpush1.msra.mxu0 0.0
          %637 = vmatprep.subr.mxu0 0.0
          %638 = vmatpush1.msra.mxu0 0.0
          %639 = vmatprep.subr.mxu0 0.0
          %640 = vmatpush1.msra.mxu0 0.0
          %641 = vmatprep.subr.mxu0 0.0
          %642 = vmatpush1.msra.mxu0 0.0
          %643 = vmatprep.subr.mxu0 0.0
          %644 = vmatpush1.msra.mxu0 0.0
          %645 = vmatprep.subr.mxu0 0.0
          %646 = vmatpush1.msra.mxu0 0.0
          %647 = vmatprep.subr.mxu0 0.0
          %648 = vmatpush1.msra.mxu0 0.0
          %649 = vmatprep.subr.mxu0 0.0
          %650 = vmatpush1.msra.mxu0 0.0
          %651 = vmatprep.subr.mxu0 0.0
          %652 = vmatpush1.msra.mxu0 0.0
          %653 = vmatprep.subr.mxu0 0.0
          %654 = vmatpush1.msra.mxu0 0.0
          %655 = vmatprep.subr.mxu0 0.0
          %656 = vmatpush1.msra.mxu0 0.0
          %657 = vmatprep.subr.mxu0 0.0
          %658 = vmatpush1.msra.mxu0 0.0
          %659 = vmatprep.subr.mxu0 0.0
          %660 = vmatpush1.msra.mxu0 0.0
          %661 = vmatprep.subr.mxu0 0.0
          %662 = vmatpush1.msra.mxu0 0.0
          %663 = vmatprep.subr.mxu0 0.0
          %664 = vmatpush1.msra.mxu0 0.0
          %665 = vmatprep.mubr.f32.mxu0 0.0
          %666 = vmatmul.mubr.f32.gmra.mrb[0].mxu0 %v599
          %v667 = vpop.f32.mrb[0].mxu0
          %v668 = vadd.f32 0.0, %v667
          %v669 = vpop.f32.mrb[0].mxu0
          %670 = vdwg.mxu0
          %v672 = vrot.slane %v668, 1
          %v674 = vadd.f32 %v668, %v672
          %v675 = vxor.u32 %v674, 2147483648
          %v676 = vmul.f32 %v675, 1.442695
          %v677 = vpow.pop %v676
          %v678 = vadd.f32 %v677, 1.0
          %v679 = vrcp.pop %v678
          %v680 = vmul.f32 1.0, %v679
          %vm681 = vcmask 516096
          %682 = vst.msk [vmem:[%s232] sm:$0x1] %vm681, %v680
        $region52: #{tpu_custom_call.1} parent=31 // pred_fallthru
          _
        %s683 = sand.u32 %s111, 1
        %s684 = scalar_lea.sflag [#allocation6], %s683
        %s685 = sand.u32 %s111, 1
        %s686 = scalar_lea.vmem [#allocation10], %s685
        // Predicated region
        $region53: #{tpu_custom_call.1} parent=31 // pred_check
          %p687 = pneg %p121
        $region54: #{tpu_custom_call.1} parent=31 // pred_check_branch
          %689 = sbr.rel (%p687) target = $region56
        $region55: #{tpu_custom_call.1} parent=31 // pred_region
          %s691 = ssub.s32 16, 16
          %692 = vsyncadd %s684, %s691
          %s693 = smul.addr %s25, 16
          %s694 = scalar_lea.hbm %s3, %s693
          %s696 = sshll.u32 %s686, 4
          %s697 = int_to_ptr.vmem [resolvable:$true] %s696
          %699 = dma.vmem_to_hbm [thread:$0]  %s697, 16, %s694, %s684
        $region56: #{tpu_custom_call.1} parent=31 // pred_fallthru
          _
      $region32: #{tpu_custom_call.1} parent=5 // pred_fallthru
        _
      %p700 = scmp.le.s32.totalorder 2, %s16
      // Predicated region
      $region57: #{tpu_custom_call.1} parent=5 // pred_check
        %p701 = pneg %p700
      $region58: #{tpu_custom_call.1} parent=5 // pred_check_branch
        %703 = sbr.rel (%p701) target = $region60
      $region59: #{tpu_custom_call.1} parent=5 // pred_region
        %s704 = ssub.s32 %s16, 2
        // Predicated region
        $region61: #{tpu_custom_call.1} parent=59 // pred_check
          %p705 = pneg %p127
        $region62: #{tpu_custom_call.1} parent=59 // pred_check_branch
          %707 = sbr.rel (%p705) target = $region64
        $region63: #{tpu_custom_call.1} parent=59 // pred_region
          %s708 = sand.u32 %s112, 1
          %s709 = scalar_lea.sflag [#allocation6], %s708
          %s710 = sand.u32 %s112, 1
          %s711 = scalar_lea.vmem [#allocation10], %s710
          %712 = dma.done %s709, 16
        $region64: #{tpu_custom_call.1} parent=59 // pred_fallthru
          _
      $region60: #{tpu_custom_call.1} parent=5 // pred_fallthru
        _
    $region6: #{tpu_custom_call.1} parent=1 // loop_footer
      %s20 = sadd.s32 1, %s16
    $region7: #{tpu_custom_call.1} parent=1 // loop_footer_branch
      %15 = sbr.rel target = $region3
    $region8: #{tpu_custom_call.1} parent=1 // loop_exit
      _
    %713 = vsyncpa [#allocation5], 1
    %s714 = scalar_lea.sflag [#allocation5], 1
    %715 = vsyncpa %s714, 1
    %716 = vsyncpa [#allocation8], 1
    %717 = vsyncpa [#allocation6], 1
    %s718 = scalar_lea.sflag [#allocation6], 1
    %719 = vsyncpa %s718, 1

</llo_original>
